<compile_context>
chip_gen: v5e
topology: v5e:2x2
jax: 0.10.0
libtpu: 0.0.40
codegen_flags: <defaults>
</compile_context>

<pallas_src>
import jax
import jax.numpy as jnp
from jax.experimental import pallas as pl
from jax.experimental.pallas import tpu as pltpu

_LANES = 128            # lane width of a vreg
_MAX_TILE_ROWS = 512    # sublane rows per grid step (512*128 f32 = 256 KiB/feature)
_SMALL_BATCH = 1024     # below this, plain fused XLA elementwise is faster


def symbolic15_kernel(a_ref, x_ref, o_ref):
    # a_ref: SMEM (5,) folded scalar params [a0, a1, a2, a3, a5]
    # x_ref: VMEM (3, tile_rows, 128)  rows are [x2, x3, x4]
    # o_ref: VMEM (tile_rows, 128)
    x2 = x_ref[0]
    x3 = x_ref[1]
    x4 = x_ref[2]
    a0 = a_ref[0]
    a1 = a_ref[1]
    a2 = a_ref[2]
    a3 = a_ref[3]
    a5 = a_ref[4]
    # r = ((x3*p0+p1) * ((p2*x2+p3)*p4*x2) + p5*x4) * p6
    #   = (x3*a0 + a1) * ((a2*x2 + a3) * x2) + a5*x4      (constants pre-folded)
    o_ref[...] = (x3 * a0 + a1) * ((a2 * x2 + a3) * x2) + a5 * x4


def _fold_params(p):
    # a0=p0*p6, a1=p1*p6, a2=p2*p4, a3=p3*p4, a5=p5*p6
    return jnp.stack(
        [p[0] * p[6], p[1] * p[6], p[2] * p[4], p[3] * p[4], p[5] * p[6]]
    ).astype(jnp.float32)


def symbolic15_forward(x, p):
    """x: (B, F>=5) float32, p: (7,) float32 -> (B,) float32."""
    x = jnp.asarray(x, jnp.float32)
    p = jnp.asarray(p, jnp.float32)
    B = x.shape[0]
    a = _fold_params(p)

    if B < _SMALL_BATCH:
        # Kernel-launch + layout overhead dwarfs the work for tiny batches.
        x2, x3, x4 = x[:, 2], x[:, 3], x[:, 4]
        return (x3 * a[0] + a[1]) * ((a[2] * x2 + a[3]) * x2) + a[4] * x4

    rows = pl.cdiv(B, _LANES)
    tile_rows = min(_MAX_TILE_ROWS, ((rows + 7) // 8) * 8)  # multiple of 8 sublanes
    num_tiles = pl.cdiv(rows, tile_rows)
    rows_pad = num_tiles * tile_rows
    b_pad = rows_pad * _LANES

    # Slice to only the 3 used features, pad the batch to the tile size, then
    # make feature-major, sublane+lane dense (3, rows_pad, 128) slabs.
    xs = x[:, 2:5]                                    # (B, 3)
    xs = jnp.pad(xs, ((0, b_pad - B), (0, 0)))        # (b_pad, 3)
    xt = xs.T.reshape(3, rows_pad, _LANES)            # (3, rows_pad, 128)

    out = pl.pallas_call(
        symbolic15_kernel,
        out_shape=jax.ShapeDtypeStruct((rows_pad, _LANES), jnp.float32),
        grid=(num_tiles,),
        in_specs=[
            # Folded params: whole (5,) array in SMEM, shared by all grid steps.
            pl.BlockSpec(memory_space=pltpu.MemorySpace.SMEM),
            # Feature slabs: one (3, tile_rows, 128) tile per grid step.
            pl.BlockSpec((3, tile_rows, _LANES), lambda i: (0, i, 0)),
        ],
        out_specs=pl.BlockSpec((tile_rows, _LANES), lambda i: (i, 0)),
        compiler_params=pltpu.CompilerParams(
            dimension_semantics=("parallel",),  # lets v7x shard across its 2 TCs
        ),
    )(a, xt)

    return out.reshape(b_pad)[:B]


def symbolic15_reference(x, p):
    # Exact PyTorch formula (un-folded), for verification.
    return ((x[:, 3] * p[0] + p[1])
            * ((p[2] * x[:, 2] + p[3]) * p[4] * x[:, 2])
            + p[5] * x[:, 4]) * p[6]


if __name__ == "__main__":
    # Deterministic parameters, exactly as in the PyTorch __init__.
    p = jnp.array(
        [1.0 / 0.092210256, -1.0281227, 1.0, 1.294536, 1.0, 1.0, -0.11011119],
        dtype=jnp.float32,
    )

    key = jax.random.PRNGKey(0)
    # Case 1: B=2048  -> Pallas path, single exact tile.
    # Case 2: B=70000 -> Pallas path, grid of 2 tiles with a padded tail.
    # Case 3: B=8     -> tiny-batch jnp fast path (original test shape).
    for B in (2048, 70000, 8):
        key, sub = jax.random.split(key)
        x = jax.random.normal(sub, (B, 5), dtype=jnp.float32)

        out = jax.block_until_ready(symbolic15_forward(x, p))
        expected = symbolic15_reference(x, p)

        assert out.shape == (B,), (out.shape, B)
        assert jnp.allclose(out, expected, rtol=1e-5, atol=1e-5), (B, out, expected)

    print("KERNEL_OK")
</pallas_src>

<mosaic_0001>
module attributes {stable_mosaic.version = 11 : i64} {
  func.func @symbolic15_kernel(%arg0: i32, %arg1: memref<5xf32, #tpu.memory_space<smem>>, %arg2: memref<3x16x128xf32, #tpu.memory_space<vmem>>, %arg3: memref<16x128xf32, #tpu.memory_space<vmem>>) attributes {dimension_semantics = [#tpu.dimension_semantics<parallel>], iteration_bounds = array<i64: 1>, scalar_prefetch = 0 : i64, scratch_operands = 0 : i64, tpu.core_type = #tpu.core_type<tc>, window_params = [{transform_indices = @transform_0, window_bounds = array<i64: 5>}, {transform_indices = @transform_1, window_bounds = array<i64: 3, 16, 128>}, {transform_indices = @transform_2, window_bounds = array<i64: 16, 128>}]} {
    %c0 = arith.constant 0 : index
    %c0_0 = arith.constant 0 : index
    %c0_1 = arith.constant 0 : index
    %0 = vector.load %arg2[%c0, %c0_0, %c0_1] : memref<3x16x128xf32, #tpu.memory_space<vmem>>, vector<1x16x128xf32>
    %1 = vector.shape_cast %0 : vector<1x16x128xf32> to vector<16x128xf32>
    %c1 = arith.constant 1 : index
    %c0_2 = arith.constant 0 : index
    %c0_3 = arith.constant 0 : index
    %2 = vector.load %arg2[%c1, %c0_2, %c0_3] : memref<3x16x128xf32, #tpu.memory_space<vmem>>, vector<1x16x128xf32>
    %3 = vector.shape_cast %2 : vector<1x16x128xf32> to vector<16x128xf32>
    %c2 = arith.constant 2 : index
    %c0_4 = arith.constant 0 : index
    %c0_5 = arith.constant 0 : index
    %4 = vector.load %arg2[%c2, %c0_4, %c0_5] : memref<3x16x128xf32, #tpu.memory_space<vmem>>, vector<1x16x128xf32>
    %5 = vector.shape_cast %4 : vector<1x16x128xf32> to vector<16x128xf32>
    %c0_6 = arith.constant 0 : index
    %6 = memref.load %arg1[%c0_6] : memref<5xf32, #tpu.memory_space<smem>>
    %c1_7 = arith.constant 1 : index
    %7 = memref.load %arg1[%c1_7] : memref<5xf32, #tpu.memory_space<smem>>
    %c2_8 = arith.constant 2 : index
    %8 = memref.load %arg1[%c2_8] : memref<5xf32, #tpu.memory_space<smem>>
    %c3 = arith.constant 3 : index
    %9 = memref.load %arg1[%c3] : memref<5xf32, #tpu.memory_space<smem>>
    %c4 = arith.constant 4 : index
    %10 = memref.load %arg1[%c4] : memref<5xf32, #tpu.memory_space<smem>>
    %11 = vector.broadcast %6 : f32 to vector<16x128xf32>
    %12 = arith.mulf %3, %11 : vector<16x128xf32>
    %13 = vector.broadcast %7 : f32 to vector<16x128xf32>
    %14 = arith.addf %12, %13 : vector<16x128xf32>
    %15 = vector.broadcast %8 : f32 to vector<16x128xf32>
    %16 = arith.mulf %15, %1 : vector<16x128xf32>
    %17 = vector.broadcast %9 : f32 to vector<16x128xf32>
    %18 = arith.addf %16, %17 : vector<16x128xf32>
    %19 = arith.mulf %18, %1 : vector<16x128xf32>
    %20 = arith.mulf %14, %19 : vector<16x128xf32>
    %21 = vector.broadcast %10 : f32 to vector<16x128xf32>
    %22 = arith.mulf %21, %5 : vector<16x128xf32>
    %23 = arith.addf %20, %22 : vector<16x128xf32>
    %c0_9 = arith.constant 0 : index
    %c0_10 = arith.constant 0 : index
    %24 = vector.load %arg3[%c0_9, %c0_10] : memref<16x128xf32, #tpu.memory_space<vmem>>, vector<16x128xf32>
    tpu.vector_store %arg3[%c0_9, %c0_10], %23 {strides = array<i32>} : memref<16x128xf32, #tpu.memory_space<vmem>>, vector<16x128xf32>,
    return
  }
  func.func @transform_0(%arg0: i32) -> i32 {
    %c0_i32 = arith.constant 0 : i32
    %c0_i32_0 = arith.constant 0 : i32
    return %c0_i32 : i32
  }
  func.func @transform_1(%arg0: i32) -> (i32, i32, i32) {
    %c0_i32 = arith.constant 0 : i32
    %c0_i32_0 = arith.constant 0 : i32
    %c0_i32_1 = arith.constant 0 : i32
    return %c0_i32, %arg0, %c0_i32_0 : i32, i32, i32
  }
  func.func @transform_2(%arg0: i32) -> (i32, i32) {
    %c0_i32 = arith.constant 0 : i32
    %c0_i32_0 = arith.constant 0 : i32
    return %arg0, %c0_i32 : i32, i32
  }
}

</mosaic_0001>

<llo_original>
// kernel: tpu_custom_call.1
$region0: #{tpu_custom_call.1}
  #allocation0 [shape = 'u32[]', space=smem, size = 0x4, offset = 0x4, fixed_abs, tag = 'smem constant byte address 0x4 - core index']
  #allocation1 [shape = 'u32[72,128]{1,0:T(1,128)}', space=vmem, size = 0x9000, scoped, tag = 'internal scratch']
  %s0 = inlined_call_operand.hbm [shape: f32[5], index: 0, kind: input, shape index: {}]
  %s1 = inlined_call_operand.hbm [shape: f32[3,16,128], index: 1, kind: input, shape index: {}]
  %s2 = inlined_call_operand.hbm [shape: f32[16,128], index: 2, kind: output, shape index: {}]
  %s3 = sld [smem:[#allocation0]]
  $region26: #{tpu_custom_call.1} parent=0
    _
  %s5 = ssub.s32 1, %s3
  %s6 = scalar_select 0, %s5, %s3
  $region1: #{tpu_custom_call.1} parent=0
    #allocation2 [shape = 'u8[512]{0}', space=smem, size = 0x200, scoped, tag = 'input window, operand 0, single buffered']
    #allocation3 [shape = 's32[1]{0}', space=sflag, size = 0x4, scoped, tag = 'scoped memory for tpu_custom_call.1']
    #allocation4 [shape = 's32[1]{0}', space=sflag, size = 0x4, scoped, tag = 'scoped memory for tpu_custom_call.1']
    #allocation5 [shape = 's32[1]{0}', space=sflag, size = 0x4, scoped, tag = 'scoped memory for tpu_custom_call.1']
    #allocation6 [shape = 'u8[24576]{0}', space=vmem, size = 0x6000, scoped, tag = 'input window, operand 1, single buffered']
    #allocation7 [shape = 'u8[8192]{0}', space=vmem, size = 0x2000, scoped, tag = 'output window, operand 0, single buffered']
    %7 = vsyncpa [#allocation5], 0
    %8 = vsyncpa [#allocation3], 0
    %9 = vsyncpa [#allocation4], 0
    // Predicated region
    $region2: #{tpu_custom_call.1} parent=1 // pred_check
      _
    $region3: #{tpu_custom_call.1} parent=1 // pred_check_branch
      %11 = sbr.rel (0) target = $region5
    $region4: #{tpu_custom_call.1} parent=1 // pred_region
      %13 = vsyncadd [#allocation5], 0
      %s15 = sshll.u32 %s0, 4
      %s16 = int_to_ptr.hbm [resolvable:$true] %s15
      %18 = dma.hbm_to_smem %s16, 16, [#allocation2], [#allocation5]
    $region5: #{tpu_custom_call.1} parent=1 // pred_fallthru
      _
    // Predicated region
    $region6: #{tpu_custom_call.1} parent=1 // pred_check
      _
    $region7: #{tpu_custom_call.1} parent=1 // pred_check_branch
      %20 = sbr.rel (0) target = $region9
    $region8: #{tpu_custom_call.1} parent=1 // pred_region
      %22 = vsyncadd [#allocation3], 0
      %s23 = sshll.u32 %s1, 4
      %s24 = int_to_ptr.hbm [resolvable:$true] %s23
      %s25 = sshll.u32 [#allocation6], 4
      %s26 = int_to_ptr.vmem [resolvable:$true] %s25
      %31 = dma.hbm_to_vmem [thread:$0]  %s24, 768, %s26, [#allocation3], 128, 128, 8
    $region9: #{tpu_custom_call.1} parent=1 // pred_fallthru
      _
    // Predicated region
    $region10: #{tpu_custom_call.1} parent=1 // pred_check
      _
    $region11: #{tpu_custom_call.1} parent=1 // pred_check_branch
      %33 = sbr.rel (0) target = $region13
    $region12: #{tpu_custom_call.1} parent=1 // pred_region
      %35 = dma.done [#allocation5], 16
    $region13: #{tpu_custom_call.1} parent=1 // pred_fallthru
      _
    // Predicated region
    $region14: #{tpu_custom_call.1} parent=1 // pred_check
      _
    $region15: #{tpu_custom_call.1} parent=1 // pred_check_branch
      %37 = sbr.rel (0) target = $region17
    $region16: #{tpu_custom_call.1} parent=1 // pred_region
      %39 = dma.done [#allocation3], 768
    $region17: #{tpu_custom_call.1} parent=1 // pred_fallthru
      _
    %40 = sfence
    %v41 = vld [vmem:[#allocation6] sm:$0xff]
    %v42 = vld [vmem:[#allocation6 + $0x8] sm:$0xff]
    %s43 = scalar_lea.vmem [#allocation6], 16
    %v44 = vld [vmem:[%s43] sm:$0xff]
    %v45 = vld [vmem:[%s43 + $0x8] sm:$0xff]
    %s46 = scalar_lea.vmem [#allocation6], 32
    %v47 = vld [vmem:[%s46] sm:$0xff]
    %v48 = vld [vmem:[%s46 + $0x8] sm:$0xff]
    %s49 = sld [smem:[#allocation2]]
    %s50 = sld [smem:[#allocation2 + $0x1]]
    %s51 = sld [smem:[#allocation2 + $0x2]]
    %s52 = sld [smem:[#allocation2 + $0x3]]
    %s53 = sld [smem:[#allocation2 + $0x4]]
    %v54 = vstv %s49
    %v55 = vmul.f32 %v44, %v54
    %v56 = vmul.f32 %v45, %v54
    %v57 = vstv %s50
    %v58 = vadd.f32 %v55, %v57
    %v59 = vadd.f32 %v56, %v57
    %v60 = vstv %s51
    %v61 = vmul.f32 %v60, %v41
    %v62 = vmul.f32 %v60, %v42
    %v63 = vstv %s52
    %v64 = vadd.f32 %v61, %v63
    %v65 = vadd.f32 %v62, %v63
    %v66 = vmul.f32 %v64, %v41
    %v67 = vmul.f32 %v65, %v42
    %v68 = vmul.f32 %v58, %v66
    %v69 = vmul.f32 %v59, %v67
    %v70 = vstv %s53
    %v71 = vmul.f32 %v70, %v47
    %v72 = vmul.f32 %v70, %v48
    %v73 = vadd.f32 %v68, %v71
    %v74 = vadd.f32 %v69, %v72
    %75 = vst [vmem:[#allocation7] sm:$0xff] %v73
    %76 = vst [vmem:[#allocation7 + $0x8] sm:$0xff] %v74
    // Predicated region
    $region18: #{tpu_custom_call.1} parent=1 // pred_check
      _
    $region19: #{tpu_custom_call.1} parent=1 // pred_check_branch
      %78 = sbr.rel (0) target = $region21
    $region20: #{tpu_custom_call.1} parent=1 // pred_region
      %80 = vsyncadd [#allocation4], 0
      %s81 = sshll.u32 [#allocation7], 4
      %s82 = int_to_ptr.vmem [resolvable:$true] %s81
      %s83 = sshll.u32 %s2, 4
      %s84 = int_to_ptr.hbm [resolvable:$true] %s83
      %89 = dma.vmem_to_hbm [thread:$0]  %s82, 256, %s84, [#allocation4], 128, 128, 8
    $region21: #{tpu_custom_call.1} parent=1 // pred_fallthru
      _
    // Predicated region
    $region22: #{tpu_custom_call.1} parent=1 // pred_check
      _
    $region23: #{tpu_custom_call.1} parent=1 // pred_check_branch
      %91 = sbr.rel (0) target = $region25
    $region24: #{tpu_custom_call.1} parent=1 // pred_region
      %93 = dma.done [#allocation4], 256
    $region25: #{tpu_custom_call.1} parent=1 // pred_fallthru
      _
    %94 = vsyncpa [#allocation3], 1
    %95 = vsyncpa [#allocation4], 1
    %96 = vsyncpa [#allocation5], 1

</llo_original>
